<compile_context>
chip_gen: v5e
topology: v5e:2x2
jax: 0.10.0
libtpu: 0.0.40
codegen_flags: <defaults>
</compile_context>

<pallas_src>
import jax
import jax.numpy as jnp
from jax.experimental import pallas as pl
from jax.experimental.pallas import tpu as pltpu


NT = 1024  # max points per tile (multiple of 256 for v6e/v7x MXU, 128 for v5e).


def _round_up(v, m):
    return (v + m - 1) // m * m


# ---------------------------------------------------------------------------
# Kernel 1: per-point MLP (conv1..conv3, BN folded) + running max over tiles.
# grid = (B, num_point_tiles); output block resident across the tile axis.
# conv3 bias/ReLU are deferred to the FC head (they commute with the max).
# ---------------------------------------------------------------------------
def _make_point_feat_kernel(n_points, nt, need_mask):
    def kernel(x_ref,
               w1_ref, c1_ref,
               w2_ref, c2_ref,
               w3_ref,
               g_ref):
        k = pl.program_id(1)

        @pl.when(k == 0)
        def _():
            g_ref[...] = jnp.full(g_ref.shape, -jnp.inf, g_ref.dtype)

        x = x_ref[0]                                                  # (nt, 8) bf16

        # conv1 + bn1 + relu (BN folded into w/c), f32 accumulation.
        h = jnp.dot(x, w1_ref[...], preferred_element_type=jnp.float32) + c1_ref[...]
        h = jnp.maximum(h, 0.0)                                       # (nt, 64)

        # conv2 + bn2 + relu
        h = jnp.dot(h.astype(jnp.bfloat16), w2_ref[...],
                    preferred_element_type=jnp.float32) + c2_ref[...]
        h = jnp.maximum(h, 0.0)                                       # (nt, 128)

        # conv3 raw pre-activation only (bias + ReLU deferred to fc head).
        h = jnp.dot(h.astype(jnp.bfloat16), w3_ref[...],
                    preferred_element_type=jnp.float32)               # (nt, 1024)

        if need_mask:
            # Final tile may be ragged: rows >= n_points hold undefined data
            # (no wrapper-side pad copy); knock them out before the max.
            row = jax.lax.broadcasted_iota(jnp.int32, (nt, 1), 0) + k * nt
            h = jnp.where(row < n_points, h, -jnp.inf)

        tile_max = jnp.max(h, axis=0, keepdims=True)                  # (1, 1024)
        g_ref[0] = jnp.maximum(g_ref[0], tile_max)

    return kernel


# ---------------------------------------------------------------------------
# Kernel 2: deferred conv3 epilogue + batched FC head
# (relu(g + c3), fc1+bn4+relu, fc2+bn5+relu, fc3).  Single call over all B.
# fc3 output is lane-dense (128 cols, first 9 real).
# ---------------------------------------------------------------------------
def fc_head_kernel(g_ref, c3_ref,
                   w4_ref, c4_ref,
                   w5_ref, c5_ref,
                   w6_ref, b6_ref,
                   o_ref):
    g = jnp.maximum(g_ref[...] + c3_ref[...], 0.0)                    # (B, 1024) f32
    h = jnp.dot(g.astype(jnp.bfloat16), w4_ref[...],
                preferred_element_type=jnp.float32) + c4_ref[...]
    h = jnp.maximum(h, 0.0)                                           # (B, 512)
    h = jnp.dot(h.astype(jnp.bfloat16), w5_ref[...],
                preferred_element_type=jnp.float32) + c5_ref[...]
    h = jnp.maximum(h, 0.0)                                           # (B, 256)
    o_ref[...] = jnp.dot(h.astype(jnp.bfloat16), w6_ref[...],
                         preferred_element_type=jnp.float32) + b6_ref[...]   # (B, 128)


# ---------------------------------------------------------------------------
# Parameter construction (deterministic, synthetic) + eval-mode BN folding.
# Weights stored in bf16 (MXU operands), per-channel shifts in f32.
# ---------------------------------------------------------------------------
def _fold_bn(w, b, gamma, beta, mean, var, eps=1e-5):
    s = gamma / jnp.sqrt(var + eps)                 # (Cout,)
    w_f = (w * s[None, :]).astype(jnp.bfloat16)
    c_f = ((b - mean) * s + beta)[None, :].astype(jnp.float32)
    return w_f, c_f


def make_params(key):
    dims = [(3, 64), (64, 128), (128, 1024), (1024, 512), (512, 256), (256, 9)]
    keys = jax.random.split(key, 4 * len(dims))
    params = []
    ki = 0
    for li, (cin, cout) in enumerate(dims):
        w = jax.random.normal(keys[ki], (cin, cout), jnp.float32) * 0.05; ki += 1
        b = jax.random.normal(keys[ki], (cout,), jnp.float32) * 0.05;     ki += 1
        if li < 5:  # layers followed by BatchNorm (bn1..bn5), eval mode
            gamma = 1.0 + 0.1 * jax.random.normal(keys[ki], (cout,), jnp.float32); ki += 1
            beta = 0.05 * jax.random.normal(keys[ki], (cout,), jnp.float32);        ki += 1
            mean = 0.02 * jnp.arange(cout, dtype=jnp.float32) / cout
            var = 1.0 + 0.1 * (jnp.arange(cout, dtype=jnp.float32) % 7) / 7.0
            wf, cf = _fold_bn(w, b, gamma, beta, mean, var)
        else:       # fc3: plain bias, no BN
            ki += 2
            wf = w.astype(jnp.bfloat16)
            cf = b[None, :].astype(jnp.float32)
        params.append((wf, cf))
    return params


# ---------------------------------------------------------------------------
# Wrapper.
# ---------------------------------------------------------------------------
def stn3d_forward(x_ncw, params, *, nt_max=NT):
    """x_ncw: (B, 3, N) float32, mirrors the PyTorch input layout."""
    B, C, N = x_ncw.shape
    assert C == 3
    (w1, c1), (w2, c2), (w3, c3), (w4, c4), (w5, c5), (w6, b6) = params

    # channel-last; pad contraction dim 3 -> 8 (zero weight rows => no-op math).
    x = jnp.transpose(x_ncw, (0, 2, 1)).astype(jnp.float32)           # (B, N, 3)
    x = jnp.pad(x, ((0, 0), (0, 0), (0, 5))).astype(jnp.bfloat16)     # (B, N, 8)

    # Points-axis tile.  No wrapper-side pad of N: grid uses cdiv and the
    # (possibly ragged) final tile is masked in-kernel.
    nt = min(nt_max, _round_up(N, 8))
    n_tiles = pl.cdiv(N, nt)
    need_mask = (N % nt) != 0

    w1p = jnp.zeros((8, w1.shape[1]), jnp.bfloat16).at[:3, :].set(w1)

    def const_spec(a):
        return pl.BlockSpec(a.shape, lambda b, k: (0,) * a.ndim)

    # --- kernel 1: per-point MLP + running max -> (B, 1, 1024) global feature ---
    g = pl.pallas_call(
        _make_point_feat_kernel(N, nt, need_mask),
        out_shape=jax.ShapeDtypeStruct((B, 1, 1024), jnp.float32),
        grid_spec=pltpu.PrefetchScalarGridSpec(
            num_scalar_prefetch=0,
            grid=(B, n_tiles),
            in_specs=[
                pl.BlockSpec((1, nt, 8), lambda b, k: (b, k, 0)),
                const_spec(w1p), const_spec(c1),
                const_spec(w2), const_spec(c2),
                const_spec(w3),
            ],
            out_specs=pl.BlockSpec((1, 1, 1024), lambda b, k: (b, 0, 0)),
        ),
        compiler_params=pltpu.CompilerParams(
            dimension_semantics=("parallel", "arbitrary"),
            vmem_limit_bytes=32 * 1024 * 1024),
    )(x, w1p, c1, w2, c2, w3)

    g = g.reshape(B, 1024)

    # Lane-dense fc3: pad 9 output columns -> 128 (zero weights/bias).
    w6p = jnp.zeros((w6.shape[0], 128), jnp.bfloat16).at[:, :9].set(w6)
    b6p = jnp.zeros((1, 128), jnp.float32).at[:, :9].set(b6)

    # --- kernel 2: deferred conv3 bias/ReLU + batched FC head ---
    out = pl.pallas_call(
        fc_head_kernel,
        out_shape=jax.ShapeDtypeStruct((B, 128), jnp.float32),
    )(g, c3, w4, c4, w5, c5, w6p, b6p)

    out9 = out[:, :9]
    iden = jnp.array([1, 0, 0, 0, 1, 0, 0, 0, 1], dtype=jnp.float32)
    return (out9 + iden[None, :]).reshape(B, 3, 3)


# ---------------------------------------------------------------------------
# Pure-JAX reference (module order: bias+ReLU before the max) with the same
# bf16/f32 quantization points as the kernels.
# ---------------------------------------------------------------------------
def stn3d_reference(x_ncw, params):
    (w1, c1), (w2, c2), (w3, c3), (w4, c4), (w5, c5), (w6, b6) = params
    f32 = jnp.float32
    x = jnp.transpose(x_ncw, (0, 2, 1)).astype(jnp.bfloat16)          # (B, N, 3)
    h = jnp.einsum("bnc,cd->bnd", x, w1, preferred_element_type=f32) + c1
    h = jnp.maximum(h, 0.0)
    h = jnp.einsum("bnc,cd->bnd", h.astype(jnp.bfloat16), w2,
                   preferred_element_type=f32) + c2
    h = jnp.maximum(h, 0.0)
    h = jnp.einsum("bnc,cd->bnd", h.astype(jnp.bfloat16), w3,
                   preferred_element_type=f32) + c3
    h = jnp.maximum(h, 0.0)
    g = jnp.max(h, axis=1)                                            # (B, 1024)
    h = jnp.maximum(jnp.einsum("bc,cd->bd", g.astype(jnp.bfloat16), w4,
                               preferred_element_type=f32) + c4, 0.0)
    h = jnp.maximum(jnp.einsum("bc,cd->bd", h.astype(jnp.bfloat16), w5,
                               preferred_element_type=f32) + c5, 0.0)
    out = jnp.einsum("bc,cd->bd", h.astype(jnp.bfloat16), w6,
                     preferred_element_type=f32) + b6
    iden = jnp.array([1, 0, 0, 0, 1, 0, 0, 0, 1], dtype=f32)
    return (out + iden[None, :]).reshape(-1, 3, 3)


if __name__ == "__main__":
    key = jax.random.PRNGKey(0)
    k_x, k_p, k_x2 = jax.random.split(key, 3)
    params = make_params(k_p)

    # Case 1: small shape (single clean tile), mirrors the PyTorch NCW input.
    B, N = 2, 16
    x = jax.random.normal(k_x, (B, 3, N), jnp.float32)
    out = jax.block_until_ready(stn3d_forward(x, params))
    ref = stn3d_reference(x, params)
    assert out.shape == (B, 3, 3), out.shape
    err1 = jnp.max(jnp.abs(out - ref))
    # Tolerance covers the (<=1 f32 ulp) reassociation of the deferred conv3
    # bias relative to the max, on top of shared bf16 matmul quantization.
    assert jnp.allclose(out, ref, atol=2e-3, rtol=2e-3), f"case1 max abs err {err1}"

    # Case 2: multi-tile running max + ragged final-tile masking path
    # (tile size forced small so N=300 spans 3 tiles, last one partial).
    B2, N2 = 2, 300
    x2 = jax.random.normal(k_x2, (B2, 3, N2), jnp.float32)
    out2 = jax.block_until_ready(stn3d_forward(x2, params, nt_max=128))
    ref2 = stn3d_reference(x2, params)
    err2 = jnp.max(jnp.abs(out2 - ref2))
    assert jnp.allclose(out2, ref2, atol=2e-3, rtol=2e-3), f"case2 max abs err {err2}"

    print("KERNEL_OK")
</pallas_src>

<mosaic_0001>
module attributes {stable_mosaic.version = 11 : i64} {
  func.func @kernel(%arg0: i32, %arg1: i32, %arg2: memref<1x16x8xbf16, #tpu.memory_space<vmem>>, %arg3: memref<8x64xbf16, #tpu.memory_space<vmem>>, %arg4: memref<1x64xf32, #tpu.memory_space<vmem>>, %arg5: memref<64x128xbf16, #tpu.memory_space<vmem>>, %arg6: memref<1x128xf32, #tpu.memory_space<vmem>>, %arg7: memref<128x1024xbf16, #tpu.memory_space<vmem>>, %arg8: memref<1x1x1024xf32, #tpu.memory_space<vmem>>) attributes {dimension_semantics = [#tpu.dimension_semantics<parallel>, #tpu.dimension_semantics<arbitrary>], iteration_bounds = array<i64: 2, 1>, scalar_prefetch = 0 : i64, scratch_operands = 0 : i64, tpu.core_type = #tpu.core_type<tc>, window_params = [{transform_indices = @transform_0, window_bounds = array<i64: 1, 16, 8>}, {pipeline_mode = #tpu.pipeline_mode<synchronous>, transform_indices = @transform_1, window_bounds = array<i64: 8, 64>}, {pipeline_mode = #tpu.pipeline_mode<synchronous>, transform_indices = @transform_2, window_bounds = array<i64: 1, 64>}, {pipeline_mode = #tpu.pipeline_mode<synchronous>, transform_indices = @transform_3, window_bounds = array<i64: 64, 128>}, {pipeline_mode = #tpu.pipeline_mode<synchronous>, transform_indices = @transform_4, window_bounds = array<i64: 1, 128>}, {pipeline_mode = #tpu.pipeline_mode<synchronous>, transform_indices = @transform_5, window_bounds = array<i64: 128, 1024>}, {transform_indices = @transform_6, window_bounds = array<i64: 1, 1, 1024>}]} {
    %c0_i32 = arith.constant 0 : i32
    %0 = arith.cmpi eq, %arg1, %c0_i32 : i32
    %1 = arith.extui %0 : i1 to i32
    %c0_i32_0 = arith.constant 0 : i32
    %2 = arith.cmpi ne, %1, %c0_i32_0 : i32
    scf.if %2 {
      %cst_24 = arith.constant 0xFF800000 : f32
      %31 = vector.broadcast %cst_24 : f32 to vector<1x1x1024xf32>
      %c0_25 = arith.constant 0 : index
      %c0_26 = arith.constant 0 : index
      %c0_27 = arith.constant 0 : index
      %32 = vector.load %arg8[%c0_25, %c0_26, %c0_27] : memref<1x1x1024xf32, #tpu.memory_space<vmem>>, vector<1x1x1024xf32>
      tpu.vector_store %arg8[%c0_25, %c0_26, %c0_27], %31 {strides = array<i32>} : memref<1x1x1024xf32, #tpu.memory_space<vmem>>, vector<1x1x1024xf32>,
    } else {
    }
    %c0 = arith.constant 0 : index
    %c0_1 = arith.constant 0 : index
    %c0_2 = arith.constant 0 : index
    %3 = vector.load %arg2[%c0, %c0_1, %c0_2] : memref<1x16x8xbf16, #tpu.memory_space<vmem>>, vector<1x16x8xbf16>
    %4 = vector.shape_cast %3 : vector<1x16x8xbf16> to vector<16x8xbf16>
    %c0_3 = arith.constant 0 : index
    %c0_4 = arith.constant 0 : index
    %5 = vector.load %arg3[%c0_3, %c0_4] : memref<8x64xbf16, #tpu.memory_space<vmem>>, vector<8x64xbf16>
    %cst = arith.constant dense<0.000000e+00> : vector<16x64xf32>
    %6 = tpu.matmul %4, %5, %cst {dimension_numbers = #tpu.dot_dimension_numbers<[1], [0], [0], [1], [0, 0, 1, 1], [], []>} : vector<16x8xbf16>, vector<8x64xbf16>, vector<16x64xf32> -> vector<16x64xf32>
    %c0_5 = arith.constant 0 : index
    %c0_6 = arith.constant 0 : index
    %7 = vector.load %arg4[%c0_5, %c0_6] : memref<1x64xf32, #tpu.memory_space<vmem>>, vector<1x64xf32>
    %8 = vector.broadcast %7 : vector<1x64xf32> to vector<16x64xf32>
    %9 = arith.addf %6, %8 : vector<16x64xf32>
    %cst_7 = arith.constant 0.000000e+00 : f32
    %10 = vector.broadcast %cst_7 : f32 to vector<16x64xf32>
    %11 = arith.maximumf %9, %10 : vector<16x64xf32>
    %12 = arith.truncf %11 : vector<16x64xf32> to vector<16x64xbf16>
    %c0_8 = arith.constant 0 : index
    %c0_9 = arith.constant 0 : index
    %13 = vector.load %arg5[%c0_8, %c0_9] : memref<64x128xbf16, #tpu.memory_space<vmem>>, vector<64x128xbf16>
    %cst_10 = arith.constant dense<0.000000e+00> : vector<16x128xf32>
    %14 = tpu.matmul %12, %13, %cst_10 {dimension_numbers = #tpu.dot_dimension_numbers<[1], [0], [0], [1], [0, 0, 1, 1], [], []>} : vector<16x64xbf16>, vector<64x128xbf16>, vector<16x128xf32> -> vector<16x128xf32>
    %c0_11 = arith.constant 0 : index
    %c0_12 = arith.constant 0 : index
    %15 = vector.load %arg6[%c0_11, %c0_12] : memref<1x128xf32, #tpu.memory_space<vmem>>, vector<1x128xf32>
    %16 = vector.broadcast %15 : vector<1x128xf32> to vector<16x128xf32>
    %17 = arith.addf %14, %16 : vector<16x128xf32>
    %cst_13 = arith.constant 0.000000e+00 : f32
    %18 = vector.broadcast %cst_13 : f32 to vector<16x128xf32>
    %19 = arith.maximumf %17, %18 : vector<16x128xf32>
    %20 = arith.truncf %19 : vector<16x128xf32> to vector<16x128xbf16>
    %c0_14 = arith.constant 0 : index
    %c0_15 = arith.constant 0 : index
    %21 = vector.load %arg7[%c0_14, %c0_15] : memref<128x1024xbf16, #tpu.memory_space<vmem>>, vector<128x1024xbf16>
    %cst_16 = arith.constant dense<0.000000e+00> : vector<16x1024xf32>
    %22 = tpu.matmul %20, %21, %cst_16 {dimension_numbers = #tpu.dot_dimension_numbers<[1], [0], [0], [1], [0, 0, 1, 1], [], []>} : vector<16x128xbf16>, vector<128x1024xbf16>, vector<16x1024xf32> -> vector<16x1024xf32>
    %cst_17 = arith.constant dense<0xFF800000> : vector<1024xf32>
    %23 = vector.multi_reduction <maximumf>, %22, %cst_17 [0] : vector<16x1024xf32> to vector<1024xf32>
    %24 = vector.shape_cast %23 : vector<1024xf32> to vector<1x1024xf32>
    %c0_18 = arith.constant 0 : index
    %c0_19 = arith.constant 0 : index
    %c0_20 = arith.constant 0 : index
    %25 = vector.load %arg8[%c0_18, %c0_19, %c0_20] : memref<1x1x1024xf32, #tpu.memory_space<vmem>>, vector<1x1x1024xf32>
    %26 = vector.shape_cast %25 : vector<1x1x1024xf32> to vector<1x1024xf32>
    %27 = arith.maximumf %26, %24 : vector<1x1024xf32>
    %c0_21 = arith.constant 0 : index
    %c0_22 = arith.constant 0 : index
    %c0_23 = arith.constant 0 : index
    %28 = vector.load %arg8[%c0_21, %c0_22, %c0_23] : memref<1x1x1024xf32, #tpu.memory_space<vmem>>, vector<1x1x1024xf32>
    %29 = vector.shape_cast %28 : vector<1x1x1024xf32> to vector<1x1024xf32>
    %30 = vector.shape_cast %27 : vector<1x1024xf32> to vector<1x1x1024xf32>
    tpu.vector_store %arg8[%c0_21, %c0_22, %c0_23], %30 {strides = array<i32>} : memref<1x1x1024xf32, #tpu.memory_space<vmem>>, vector<1x1x1024xf32>,
    return
  }
  func.func @transform_0(%arg0: i32, %arg1: i32) -> (i32, i32, i32) {
    %c0_i32 = arith.constant 0 : i32
    %c0_i32_0 = arith.constant 0 : i32
    return %arg0, %arg1, %c0_i32 : i32, i32, i32
  }
  func.func @transform_1(%arg0: i32, %arg1: i32) -> (i32, i32) {
    %c0_i32 = arith.constant 0 : i32
    %c0_i32_0 = arith.constant 0 : i32
    %c0_i32_1 = arith.constant 0 : i32
    return %c0_i32, %c0_i32_0 : i32, i32
  }
  func.func @transform_2(%arg0: i32, %arg1: i32) -> (i32, i32) {
    %c0_i32 = arith.constant 0 : i32
    %c0_i32_0 = arith.constant 0 : i32
    %c0_i32_1 = arith.constant 0 : i32
    return %c0_i32, %c0_i32_0 : i32, i32
  }
  func.func @transform_3(%arg0: i32, %arg1: i32) -> (i32, i32) {
    %c0_i32 = arith.constant 0 : i32
    %c0_i32_0 = arith.constant 0 : i32
    %c0_i32_1 = arith.constant 0 : i32
    return %c0_i32, %c0_i32_0 : i32, i32
  }
  func.func @transform_4(%arg0: i32, %arg1: i32) -> (i32, i32) {
    %c0_i32 = arith.constant 0 : i32
    %c0_i32_0 = arith.constant 0 : i32
    %c0_i32_1 = arith.constant 0 : i32
    return %c0_i32, %c0_i32_0 : i32, i32
  }
  func.func @transform_5(%arg0: i32, %arg1: i32) -> (i32, i32) {
    %c0_i32 = arith.constant 0 : i32
    %c0_i32_0 = arith.constant 0 : i32
    %c0_i32_1 = arith.constant 0 : i32
    return %c0_i32, %c0_i32_0 : i32, i32
  }
  func.func @transform_6(%arg0: i32, %arg1: i32) -> (i32, i32, i32) {
    %c0_i32 = arith.constant 0 : i32
    %c0_i32_0 = arith.constant 0 : i32
    %c0_i32_1 = arith.constant 0 : i32
    return %arg0, %c0_i32, %c0_i32_0 : i32, i32, i32
  }
}

</mosaic_0001>

<llo_original>
// kernel: tpu_custom_call.1
$region0: #{tpu_custom_call.1}
  #allocation0 [shape = 'u32[]', space=smem, size = 0x4, offset = 0x4, fixed_abs, tag = 'smem constant byte address 0x4 - core index']
  #allocation1 [shape = 'u32[72,128]{1,0:T(1,128)}', space=vmem, size = 0x9000, scoped, tag = 'internal scratch']
  %s0 = inlined_call_operand.vmem [shape: bf16[2,16,8], index: 0, kind: input, shape index: {}]
  %s1 = inlined_call_operand.vmem [shape: bf16[8,64], index: 1, kind: input, shape index: {}]
  %s2 = inlined_call_operand.vmem [shape: f32[1,64], index: 2, kind: input, shape index: {}]
  %s3 = inlined_call_operand.hbm [shape: bf16[64,128], index: 3, kind: input, shape index: {}]
  %s4 = inlined_call_operand.vmem [shape: f32[1,128], index: 4, kind: input, shape index: {}]
  %s5 = inlined_call_operand.hbm [shape: bf16[128,1024], index: 5, kind: input, shape index: {}]
  %s6 = inlined_call_operand.hbm [shape: f32[2,1,1024], index: 6, kind: output, shape index: {}]
  %s7 = sld [smem:[#allocation0]]
  $region69: #{tpu_custom_call.1} parent=0
    _
  %s9 = ssub.s32 1, %s7
  %s10 = scalar_select 0, %s9, %s7
  $region1: #{tpu_custom_call.1} parent=0
    #allocation2 [shape = 'u8[16384]{0}', space=vmem, size = 0x4000, scoped, tag = 'input window, operand 3, single buffered']
    #allocation3 [shape = 's32[2]{0}', space=sflag, size = 0x8, scoped, tag = 'scoped memory for tpu_custom_call.1']
    #allocation4 [shape = 's32[2]{0}', space=sflag, size = 0x8, scoped, tag = 'scoped memory for tpu_custom_call.1']
    #allocation5 [shape = 'u8[262144]{0}', space=vmem, size = 0x40000, scoped, tag = 'input window, operand 5, single buffered']
    #allocation6 [shape = 's32[1]{0}', space=sflag, size = 0x4, scoped, tag = 'scoped memory for tpu_custom_call.1']
    #allocation7 [shape = 'u8[8192]{0}', space=vmem, size = 0x2000, scoped, tag = 'output window, operand 0']
    %11 = vsyncpa [#allocation3], 0
    %12 = vsyncpa [#allocation6], 0
    %13 = vsyncpa [#allocation4], 0
    %s14 = scalar_lea.sflag [#allocation4], 1
    %15 = vsyncpa %s14, 0
    loop: start=0, step=1, limit=4
    $region2: #{tpu_custom_call.1} parent=1 // loop_pre_header
      _
    $region3: #{tpu_custom_call.1} parent=1 // loop_header
      %s17 = sphi 0, %s21
      %p18 = scmp.ge.s32.totalorder %s17, 4
      %s24 = sphi 0, %s36
      %s25 = sphi 0, %s32
      %s26 = sphi 0, %s24
      %s27 = sphi 0, %s25
      %s28 = sphi 0, %s26
      %s29 = sphi 0, %s27
      %s41 = sphi 0, %s43
      %s44 = sphi 0, %s41
      %s45 = sphi 0, %s44
      %s61 = sphi 0, %s45
      %s65 = sphi 0, %s65
      %s67 = sphi 0, %s65
      %s68 = sphi 0, %s67
      %s82 = sphi 0, %s68
      %s86 = sphi 0, %s86
      %s88 = sphi 0, %s86
      %s89 = sphi 0, %s88
      %s103 = sphi 0, %s89
      %s107 = sphi 0, %s107
      %s109 = sphi 0, %s107
      %s110 = sphi 0, %s109
      %s124 = sphi 0, %s110
      %s128 = sphi 0, %s128
      %s130 = sphi 0, %s128
      %s131 = sphi 0, %s130
      %s145 = sphi 0, %s131
      %s149 = sphi 0, %s149
      %s151 = sphi 0, %s149
      %s152 = sphi 0, %s151
      %s166 = sphi 0, %s152
      %s172 = sphi 0, %s174
      %s175 = sphi 0, %s172
      %s176 = sphi 0, %s175
      %s192 = sphi 0, %s176
    $region4: #{tpu_custom_call.1} parent=1 // loop_header_branch
      %20 = sbr.rel (%p18) target = $region8
    $region5: #{tpu_custom_call.1} parent=1 // loop_body
      %s22 = ssub.s32 %s17, 1
      %s23 = ssub.s32 %s17, 2
      %s30 = sadd.s32 1, %s25
      %p31 = scmp.ge.s32.totalorder %s30, 1
      %s32 = scalar_select %p31, 0, %s30
      %s33 = sadd.s32 1, %s24
      %s34 = scalar_select %p31, %s33, %s24
      %p35 = scmp.ge.s32.totalorder %s34, 2
      %s36 = scalar_select %p35, 0, %s34
      %s37 = ssub.s32 %s24, %s36
      %s38 = ssub.s32 %s25, %s32
      %s39 = sor.u32 %s37, %s38
      %p40 = scmp.eq.s32.totalorder %s39, 0
      %s42 = sadd.s32 %s41, 1
      %s43 = scalar_select %p40, %s41, %s42
      %p46 = pneg %p40
      %p47 = scmp.eq.s32.totalorder %s17, 1
      %p48 = por %p46, %p47
      %p49 = scmp.ne.s32.totalorder %s41, %s44
      %p50 = scmp.eq.s32.totalorder %s17, 0
      %p51 = por %p49, %p50
      %p52 = scmp.ne.s32.totalorder %s41, %s44
      %p53 = scmp.eq.s32.totalorder %s22, 1
      %p54 = por %p52, %p53
      %p55 = scmp.ne.s32.totalorder %s44, %s45
      %p56 = scmp.eq.s32.totalorder %s22, 0
      %p57 = por %p55, %p56
      %p58 = scmp.ne.s32.totalorder %s44, %s45
      %p59 = scmp.eq.s32.totalorder %s23, 1
      %p60 = por %p58, %p59
      %p62 = scmp.ne.s32.totalorder %s45, %s61
      %p63 = scmp.eq.s32.totalorder %s23, 0
      %p64 = por %p62, %p63
      %s66 = sadd.s32 %s65, 1
      %p69 = scmp.eq.s32.totalorder %s17, 1
      %p70 = scmp.ne.s32.totalorder %s65, %s67
      %p71 = scmp.eq.s32.totalorder %s17, 0
      %p72 = por %p70, %p71
      %p73 = scmp.ne.s32.totalorder %s65, %s67
      %p74 = scmp.eq.s32.totalorder %s22, 1
      %p75 = por %p73, %p74
      %p76 = scmp.ne.s32.totalorder %s67, %s68
      %p77 = scmp.eq.s32.totalorder %s22, 0
      %p78 = por %p76, %p77
      %p79 = scmp.ne.s32.totalorder %s67, %s68
      %p80 = scmp.eq.s32.totalorder %s23, 1
      %p81 = por %p79, %p80
      %p83 = scmp.ne.s32.totalorder %s68, %s82
      %p84 = scmp.eq.s32.totalorder %s23, 0
      %p85 = por %p83, %p84
      %s87 = sadd.s32 %s86, 1
      %p90 = scmp.eq.s32.totalorder %s17, 1
      %p91 = scmp.ne.s32.totalorder %s86, %s88
      %p92 = scmp.eq.s32.totalorder %s17, 0
      %p93 = por %p91, %p92
      %p94 = scmp.ne.s32.totalorder %s86, %s88
      %p95 = scmp.eq.s32.totalorder %s22, 1
      %p96 = por %p94, %p95
      %p97 = scmp.ne.s32.totalorder %s88, %s89
      %p98 = scmp.eq.s32.totalorder %s22, 0
      %p99 = por %p97, %p98
      %p100 = scmp.ne.s32.totalorder %s88, %s89
      %p101 = scmp.eq.s32.totalorder %s23, 1
      %p102 = por %p100, %p101
      %p104 = scmp.ne.s32.totalorder %s89, %s103
      %p105 = scmp.eq.s32.totalorder %s23, 0
      %p106 = por %p104, %p105
      %s108 = sadd.s32 %s107, 1
      %p111 = scmp.eq.s32.totalorder %s17, 1
      %p112 = scmp.ne.s32.totalorder %s107, %s109
      %p113 = scmp.eq.s32.totalorder %s17, 0
      %p114 = por %p112, %p113
      %p115 = scmp.ne.s32.totalorder %s107, %s109
      %p116 = scmp.eq.s32.totalorder %s22, 1
      %p117 = por %p115, %p116
      %p118 = scmp.ne.s32.totalorder %s109, %s110
      %p119 = scmp.eq.s32.totalorder %s22, 0
      %p120 = por %p118, %p119
      %p121 = scmp.ne.s32.totalorder %s109, %s110
      %p122 = scmp.eq.s32.totalorder %s23, 1
      %p123 = por %p121, %p122
      %p125 = scmp.ne.s32.totalorder %s110, %s124
      %p126 = scmp.eq.s32.totalorder %s23, 0
      %p127 = por %p125, %p126
      %s129 = sadd.s32 %s128, 1
      %p132 = scmp.eq.s32.totalorder %s17, 1
      %p133 = scmp.ne.s32.totalorder %s128, %s130
      %p134 = scmp.eq.s32.totalorder %s17, 0
      %p135 = por %p133, %p134
      %p136 = scmp.ne.s32.totalorder %s128, %s130
      %p137 = scmp.eq.s32.totalorder %s22, 1
      %p138 = por %p136, %p137
      %p139 = scmp.ne.s32.totalorder %s130, %s131
      %p140 = scmp.eq.s32.totalorder %s22, 0
      %p141 = por %p139, %p140
      %p142 = scmp.ne.s32.totalorder %s130, %s131
      %p143 = scmp.eq.s32.totalorder %s23, 1
      %p144 = por %p142, %p143
      %p146 = scmp.ne.s32.totalorder %s131, %s145
      %p147 = scmp.eq.s32.totalorder %s23, 0
      %p148 = por %p146, %p147
      %s150 = sadd.s32 %s149, 1
      %p153 = scmp.eq.s32.totalorder %s17, 1
      %p154 = scmp.ne.s32.totalorder %s149, %s151
      %p155 = scmp.eq.s32.totalorder %s17, 0
      %p156 = por %p154, %p155
      %p157 = scmp.ne.s32.totalorder %s149, %s151
      %p158 = scmp.eq.s32.totalorder %s22, 1
      %p159 = por %p157, %p158
      %p160 = scmp.ne.s32.totalorder %s151, %s152
      %p161 = scmp.eq.s32.totalorder %s22, 0
      %p162 = por %p160, %p161
      %p163 = scmp.ne.s32.totalorder %s151, %s152
      %p164 = scmp.eq.s32.totalorder %s23, 1
      %p165 = por %p163, %p164
      %p167 = scmp.ne.s32.totalorder %s152, %s166
      %p168 = scmp.eq.s32.totalorder %s23, 0
      %p169 = por %p167, %p168
      %s170 = ssub.s32 %s24, %s36
      %p171 = scmp.eq.s32.totalorder %s170, 0
      %s173 = sadd.s32 %s172, 1
      %s174 = scalar_select %p171, %s172, %s173
      %p177 = pneg %p171
      %p178 = scmp.eq.s32.totalorder %s17, 1
      %p179 = por %p177, %p178
      %p180 = scmp.ne.s32.totalorder %s172, %s175
      %p181 = scmp.eq.s32.totalorder %s17, 0
      %p182 = por %p180, %p181
      %p183 = scmp.ne.s32.totalorder %s172, %s175
      %p184 = scmp.eq.s32.totalorder %s22, 1
      %p185 = por %p183, %p184
      %p186 = scmp.ne.s32.totalorder %s175, %s176
      %p187 = scmp.eq.s32.totalorder %s22, 0
      %p188 = por %p186, %p187
      %p189 = scmp.ne.s32.totalorder %s175, %s176
      %p190 = scmp.eq.s32.totalorder %s23, 1
      %p191 = por %p189, %p190
      %p193 = scmp.ne.s32.totalorder %s176, %s192
      %p194 = scmp.eq.s32.totalorder %s23, 0
      %p195 = por %p193, %p194
      %p196 = scmp.le.s32.totalorder 1, %s17
      %p197 = scmp.lt.s32.totalorder %s17, 3
      %p198 = pnand %p196, %p197
      %p199 = pneg %p198
      // Predicated region
      $region9: #{tpu_custom_call.1} parent=5 // pred_check
        _
      $region10: #{tpu_custom_call.1} parent=5 // pred_check_branch
        %201 = sbr.rel (%p198) target = $region12
      $region11: #{tpu_custom_call.1} parent=5 // pred_region
        %s202 = ssub.s32 %s17, 1
        // Predicated region
        $region13: #{tpu_custom_call.1} parent=11 // pred_check
          %p203 = pneg %p78
        $region14: #{tpu_custom_call.1} parent=11 // pred_check_branch
          %205 = sbr.rel (%p203) target = $region16
        $region15: #{tpu_custom_call.1} parent=11 // pred_region
          _
        $region16: #{tpu_custom_call.1} parent=11 // pred_fallthru
          _
        // Predicated region
        $region17: #{tpu_custom_call.1} parent=11 // pred_check
          %p206 = pneg %p99
        $region18: #{tpu_custom_call.1} parent=11 // pred_check_branch
          %208 = sbr.rel (%p206) target = $region20
        $region19: #{tpu_custom_call.1} parent=11 // pred_region
          _
        $region20: #{tpu_custom_call.1} parent=11 // pred_fallthru
          _
        // Predicated region
        $region21: #{tpu_custom_call.1} parent=11 // pred_check
          %p209 = pneg %p120
        $region22: #{tpu_custom_call.1} parent=11 // pred_check_branch
          %211 = sbr.rel (%p209) target = $region24
        $region23: #{tpu_custom_call.1} parent=11 // pred_region
          %213 = vsyncadd [#allocation3], 0
          %s214 = sshll.u32 %s3, 4
          %s215 = int_to_ptr.hbm [resolvable:$true] %s214
          %s216 = sshll.u32 [#allocation2], 4
          %s217 = int_to_ptr.vmem [resolvable:$true] %s216
          %222 = dma.hbm_to_vmem [thread:$0]  %s215, 512, %s217, [#allocation3], 64, 64, 4
        $region24: #{tpu_custom_call.1} parent=11 // pred_fallthru
          _
        // Predicated region
        $region25: #{tpu_custom_call.1} parent=11 // pred_check
          %p223 = pneg %p141
        $region26: #{tpu_custom_call.1} parent=11 // pred_check_branch
          %225 = sbr.rel (%p223) target = $region28
        $region27: #{tpu_custom_call.1} parent=11 // pred_region
          _
        $region28: #{tpu_custom_call.1} parent=11 // pred_fallthru
          _
        // Predicated region
        $region29: #{tpu_custom_call.1} parent=11 // pred_check
          %p226 = pneg %p162
        $region30: #{tpu_custom_call.1} parent=11 // pred_check_branch
          %228 = sbr.rel (%p226) target = $region32
        $region31: #{tpu_custom_call.1} parent=11 // pred_region
          %230 = vsyncadd [#allocation6], 0
          %s231 = sshll.u32 %s5, 4
          %s232 = int_to_ptr.hbm [resolvable:$true] %s231
          %s233 = sshll.u32 [#allocation5], 4
          %s234 = int_to_ptr.vmem [resolvable:$true] %s233
          %239 = dma.hbm_to_vmem [thread:$0]  %s232, 8192, %s234, [#allocation6], 512, 512, 32
        $region32: #{tpu_custom_call.1} parent=11 // pred_fallthru
          _
      $region12: #{tpu_custom_call.1} parent=5 // pred_fallthru
        _
      %p240 = scmp.lt.s32.totalorder %s17, 2
      // Predicated region
      $region33: #{tpu_custom_call.1} parent=5 // pred_check
        %p241 = pneg %p240
      $region34: #{tpu_custom_call.1} parent=5 // pred_check_branch
        %243 = sbr.rel (%p241) target = $region36
      $region35: #{tpu_custom_call.1} parent=5 // pred_region
        // Predicated region
        $region37: #{tpu_custom_call.1} parent=35 // pred_check
          %p244 = pneg %p51
        $region38: #{tpu_custom_call.1} parent=35 // pred_check_branch
          %246 = sbr.rel (%p244) target = $region40
        $region39: #{tpu_custom_call.1} parent=35 // pred_region
          %s247 = smul.u32 2, %s25
          %p248 = scmp.lt.s32.totalorder %s24, 1
          %s249 = scalar_select %p248, %s24, 1
          %p250 = scmp.lt.s32.totalorder %s247, 1
          %s251 = scalar_select %p250, %s247, 1
          %s252 = smul.addr %s249, 2
          %s253 = sadd.s32 %s251, %s252
          %s254 = smul.addr %s253, 4
          %s255 = scalar_lea.vmem %s0, %s254
          %s256 = smul.u32 2, %s25
        $region40: #{tpu_custom_call.1} parent=35 // pred_fallthru
          _
      $region36: #{tpu_custom_call.1} parent=5 // pred_fallthru
        _
      %p257 = scmp.le.s32.totalorder 1, %s17
      %p258 = scmp.lt.s32.totalorder %s17, 3
      %p259 = pnand %p257, %p258
      %p260 = pneg %p259
      // Predicated region
      $region41: #{tpu_custom_call.1} parent=5 // pred_check
        _
      $region42: #{tpu_custom_call.1} parent=5 // pred_check_branch
        %262 = sbr.rel (%p259) target = $region44
      $region43: #{tpu_custom_call.1} parent=5 // pred_region
        %s263 = ssub.s32 %s17, 1
        // Predicated region
        $region45: #{tpu_custom_call.1} parent=43 // pred_check
          %p264 = pneg %p120
        $region46: #{tpu_custom_call.1} parent=43 // pred_check_branch
          %266 = sbr.rel (%p264) target = $region48
        $region47: #{tpu_custom_call.1} parent=43 // pred_region
          %268 = dma.done [#allocation3], 512
        $region48: #{tpu_custom_call.1} parent=43 // pred_fallthru
          _
        // Predicated region
        $region49: #{tpu_custom_call.1} parent=43 // pred_check
          %p269 = pneg %p162
        $region50: #{tpu_custom_call.1} parent=43 // pred_check_branch
          %271 = sbr.rel (%p269) target = $region52
        $region51: #{tpu_custom_call.1} parent=43 // pred_region
          %273 = dma.done [#allocation6], 8192
        $region52: #{tpu_custom_call.1} parent=43 // pred_fallthru
          _
        %s274 = smul.u32 2, %s27
        %p275 = scmp.lt.s32.totalorder %s26, 1
        %s276 = scalar_select %p275, %s26, 1
        %p277 = scmp.lt.s32.totalorder %s274, 1
        %s278 = scalar_select %p277, %s274, 1
        %s279 = smul.addr %s276, 2
        %s280 = sadd.s32 %s278, %s279
        %s281 = smul.addr %s280, 4
        %s282 = scalar_lea.vmem %s0, %s281
        %p283 = pneg %p57
        %p284 = pneg %p54
        %p285 = pneg %p78
        %p286 = pneg %p75
        %p287 = pneg %p99
        %p288 = pneg %p96
        %p289 = pneg %p120
        %p290 = pneg %p117
        %p291 = pneg %p141
        %p292 = pneg %p138
        %p293 = pneg %p162
        %p294 = pneg %p159
        %p295 = pneg %p188
        %p296 = pneg %p185
        %s297 = sand.u32 %s175, 1
        %s298 = scalar_lea.sflag [#allocation4], %s297
        %s299 = sand.u32 %s175, 1
        %s300 = smul.addr %s299, 8
        %s301 = scalar_lea.vmem [#allocation7], %s300
        %s302 = smul.u32 2, %s27
        %p303 = scmp.lt.s32.totalorder %s26, 1
        %s304 = scalar_select %p303, %s26, 1
        %p305 = scmp.lt.s32.totalorder %s302, 1
        %s306 = scalar_select %p305, %s302, 1
        %s307 = smul.addr %s304, 2
        %s308 = sadd.s32 %s306, %s307
        %s309 = smul.addr %s308, 4
        %s310 = scalar_lea.vmem %s0, %s309
        %s311 = smul.u32 2, %s27
        %p313 = scmp.eq.s32.totalorder %s27, 0
        // Predicated region
        $region53: #{tpu_custom_call.1} parent=43 // pred_check
          %p314 = pneg %p313
        $region54: #{tpu_custom_call.1} parent=43 // pred_check_branch
          %316 = sbr.rel (%p314) target = $region56
        $region55: #{tpu_custom_call.1} parent=43 // pred_region
          %317 = vst [vmem:[%s301] sm:$0xff] -inf
        $region56: #{tpu_custom_call.1} parent=43 // pred_fallthru
          _
        %v318 = vld [vmem:[%s310] sm:$0xf]
        %v319 = vld [vmem:[%s310 + $0x4] sm:$0xf]
        %v320 = vld [vmem:[%s1] sm:$0xf]
        %v321 = vld [vmem:[%s2] sm:$0x1]
        %v323 = vperm.slane %v321, 0
        %v327 = vunpack.c.l.b16 %v318
        %v328 = vunpack.c.l.b16 %v319
        %v329 = vpack.c.b16 %v328, %v327
        %vm330 = vcmask 64512
        %v332 = vsel %vm330, %v329, 0
        %vm334 = vcmask 1043456
        %v336 = vsel %vm334, %v320, 0
        %338 = vmatpush.bf16.msra.mxu0 0
        %339 = vmatpush.bf16.msra.mxu0 0
        %340 = vmatpush.bf16.msra.mxu0 0
        %341 = vmatpush.bf16.msra.mxu0 0
        %342 = vmatpush.bf16.msra.mxu0 0
        %343 = vmatpush.bf16.msra.mxu0 0
        %344 = vmatpush.bf16.msra.mxu0 0
        %345 = vmatpush.bf16.msra.mxu0 %v336
        %346 = vmatmul.bf16.gmra.mxu0 %v332
        %v347 = vpop.f32.mrf.mxu0
        %v348 = vadd.f32 %v323, %v347
        %v349 = vpop.f32.mrf.mxu0
        %v350 = vadd.f32 %v323, %v349
        %351 = vdwg.mxu0
        %v352 = vmax.f32 %v348, 0.0
        %v353 = vmax.f32 %v350, 0.0
        %v354 = vpack.c.bf16 %v353, %v352
        %v355 = vld [vmem:[#allocation2] sm:$0xf]
        %v356 = vld [vmem:[#allocation2 + $0x4] sm:$0xf]
        %v357 = vld [vmem:[#allocation2 + $0x8] sm:$0xf]
        %v358 = vld [vmem:[#allocation2 + $0xc] sm:$0xf]
        %v359 = vld [vmem:[#allocation2 + $0x10] sm:$0xf]
        %v360 = vld [vmem:[#allocation2 + $0x14] sm:$0xf]
        %v361 = vld [vmem:[#allocation2 + $0x18] sm:$0xf]
        %v362 = vld [vmem:[#allocation2 + $0x1c] sm:$0xf]
        %v363 = vld [vmem:[%s4] sm:$0x1]
        %v365 = vperm.slane %v363, 0
        %v375 = vunpack.c.l.b16 %v355
        %v376 = vunpack.c.l.b16 %v356
        %v377 = vunpack.c.l.b16 %v357
        %v378 = vunpack.c.l.b16 %v358
        %v379 = vunpack.c.l.b16 %v359
        %v380 = vunpack.c.l.b16 %v360
        %v381 = vunpack.c.l.b16 %v361
        %v382 = vunpack.c.l.b16 %v362
        %v383 = vpack.c.b16 %v376, %v375
        %v384 = vpack.c.b16 %v378, %v377
        %v385 = vpack.c.b16 %v380, %v379
        %v386 = vpack.c.b16 %v382, %v381
        %vm391 = vcmask 523264
        %v393 = vsel %vm391, %v354, 0
        %395 = vmatpush.bf16.msra.mxu0 0
        %396 = vmatpush.bf16.msra.mxu0 0
        %397 = vmatpush.bf16.msra.mxu0 0
        %398 = vmatpush.bf16.msra.mxu0 0
        %399 = vmatpush.bf16.msra.mxu0 %v386
        %400 = vmatpush.bf16.msra.mxu0 %v385
        %401 = vmatpush.bf16.msra.mxu0 %v384
        %402 = vmatpush.bf16.msra.mxu0 %v383
        %403 = vmatmul.bf16.gmra.mxu0 %v393
        %v404 = vpop.f32.mrf.mxu0
        %v405 = vadd.f32 %v365, %v404
        %v406 = vpop.f32.mrf.mxu0
        %v407 = vadd.f32 %v365, %v406
        %408 = vdwg.mxu0
        %v409 = vmax.f32 %v405, 0.0
        %v410 = vmax.f32 %v407, 0.0
        %v411 = vpack.c.bf16 %v410, %v409
        %v412 = vld [vmem:[#allocation5] sm:$0xff]
        %v413 = vld [vmem:[#allocation5 + $0x8] sm:$0xff]
        %v414 = vld [vmem:[#allocation5 + $0x10] sm:$0xff]
        %v415 = vld [vmem:[#allocation5 + $0x18] sm:$0xff]
        %v416 = vld [vmem:[#allocation5 + $0x20] sm:$0xff]
        %v417 = vld [vmem:[#allocation5 + $0x28] sm:$0xff]
        %v418 = vld [vmem:[#allocation5 + $0x30] sm:$0xff]
        %v419 = vld [vmem:[#allocation5 + $0x38] sm:$0xff]
        %v420 = vld [vmem:[#allocation5 + $0x40] sm:$0xff]
        %v421 = vld [vmem:[#allocation5 + $0x48] sm:$0xff]
        %v422 = vld [vmem:[#allocation5 + $0x50] sm:$0xff]
        %v423 = vld [vmem:[#allocation5 + $0x58] sm:$0xff]
        %v424 = vld [vmem:[#allocation5 + $0x60] sm:$0xff]
        %v425 = vld [vmem:[#allocation5 + $0x68] sm:$0xff]
        %v426 = vld [vmem:[#allocation5 + $0x70] sm:$0xff]
        %v427 = vld [vmem:[#allocation5 + $0x78] sm:$0xff]
        %v428 = vld [vmem:[#allocation5 + $0x80] sm:$0xff]
        %v429 = vld [vmem:[#allocation5 + $0x88] sm:$0xff]
        %v430 = vld [vmem:[#allocation5 + $0x90] sm:$0xff]
        %v431 = vld [vmem:[#allocation5 + $0x98] sm:$0xff]
        %v432 = vld [vmem:[#allocation5 + $0xa0] sm:$0xff]
        %v433 = vld [vmem:[#allocation5 + $0xa8] sm:$0xff]
        %v434 = vld [vmem:[#allocation5 + $0xb0] sm:$0xff]
        %v435 = vld [vmem:[#allocation5 + $0xb8] sm:$0xff]
        %v436 = vld [vmem:[#allocation5 + $0xc0] sm:$0xff]
        %v437 = vld [vmem:[#allocation5 + $0xc8] sm:$0xff]
        %v438 = vld [vmem:[#allocation5 + $0xd0] sm:$0xff]
        %v439 = vld [vmem:[#allocation5 + $0xd8] sm:$0xff]
        %v440 = vld [vmem:[#allocation5 + $0xe0] sm:$0xff]
        %v441 = vld [vmem:[#allocation5 + $0xe8] sm:$0xff]
        %v442 = vld [vmem:[#allocation5 + $0xf0] sm:$0xff]
        %v443 = vld [vmem:[#allocation5 + $0xf8] sm:$0xff]
        %v444 = vld [vmem:[#allocation5 + $0x100] sm:$0xff]
        %v445 = vld [vmem:[#allocation5 + $0x108] sm:$0xff]
        %v446 = vld [vmem:[#allocation5 + $0x110] sm:$0xff]
        %v447 = vld [vmem:[#allocation5 + $0x118] sm:$0xff]
        %v448 = vld [vmem:[#allocation5 + $0x120] sm:$0xff]
        %v449 = vld [vmem:[#allocation5 + $0x128] sm:$0xff]
        %v450 = vld [vmem:[#allocation5 + $0x130] sm:$0xff]
        %v451 = vld [vmem:[#allocation5 + $0x138] sm:$0xff]
        %v452 = vld [vmem:[#allocation5 + $0x140] sm:$0xff]
        %v453 = vld [vmem:[#allocation5 + $0x148] sm:$0xff]
        %v454 = vld [vmem:[#allocation5 + $0x150] sm:$0xff]
        %v455 = vld [vmem:[#allocation5 + $0x158] sm:$0xff]
        %v456 = vld [vmem:[#allocation5 + $0x160] sm:$0xff]
        %v457 = vld [vmem:[#allocation5 + $0x168] sm:$0xff]
        %v458 = vld [vmem:[#allocation5 + $0x170] sm:$0xff]
        %v459 = vld [vmem:[#allocation5 + $0x178] sm:$0xff]
        %v460 = vld [vmem:[#allocation5 + $0x180] sm:$0xff]
        %v461 = vld [vmem:[#allocation5 + $0x188] sm:$0xff]
        %v462 = vld [vmem:[#allocation5 + $0x190] sm:$0xff]
        %v463 = vld [vmem:[#allocation5 + $0x198] sm:$0xff]
        %v464 = vld [vmem:[#allocation5 + $0x1a0] sm:$0xff]
        %v465 = vld [vmem:[#allocation5 + $0x1a8] sm:$0xff]
        %v466 = vld [vmem:[#allocation5 + $0x1b0] sm:$0xff]
        %v467 = vld [vmem:[#allocation5 + $0x1b8] sm:$0xff]
        %v468 = vld [vmem:[#allocation5 + $0x1c0] sm:$0xff]
        %v469 = vld [vmem:[#allocation5 + $0x1c8] sm:$0xff]
        %v470 = vld [vmem:[#allocation5 + $0x1d0] sm:$0xff]
        %v471 = vld [vmem:[#allocation5 + $0x1d8] sm:$0xff]
        %v472 = vld [vmem:[#allocation5 + $0x1e0] sm:$0xff]
        %v473 = vld [vmem:[#allocation5 + $0x1e8] sm:$0xff]
        %v474 = vld [vmem:[#allocation5 + $0x1f0] sm:$0xff]
        %v475 = vld [vmem:[#allocation5 + $0x1f8] sm:$0xff]
        %v540 = vunpack.c.l.b16 %v412
        %v541 = vunpack.c.h.b16 %v412
        %v542 = vunpack.c.l.b16 %v413
        %v543 = vunpack.c.h.b16 %v413
        %v544 = vunpack.c.l.b16 %v414
        %v545 = vunpack.c.h.b16 %v414
        %v546 = vunpack.c.l.b16 %v415
        %v547 = vunpack.c.h.b16 %v415
        %v548 = vunpack.c.l.b16 %v416
        %v549 = vunpack.c.h.b16 %v416
        %v550 = vunpack.c.l.b16 %v417
        %v551 = vunpack.c.h.b16 %v417
        %v552 = vunpack.c.l.b16 %v418
        %v553 = vunpack.c.h.b16 %v418
        %v554 = vunpack.c.l.b16 %v419
        %v555 = vunpack.c.h.b16 %v419
        %v556 = vunpack.c.l.b16 %v420
        %v557 = vunpack.c.h.b16 %v420
        %v558 = vunpack.c.l.b16 %v421
        %v559 = vunpack.c.h.b16 %v421
        %v560 = vunpack.c.l.b16 %v422
        %v561 = vunpack.c.h.b16 %v422
        %v562 = vunpack.c.l.b16 %v423
        %v563 = vunpack.c.h.b16 %v423
        %v564 = vunpack.c.l.b16 %v424
        %v565 = vunpack.c.h.b16 %v424
        %v566 = vunpack.c.l.b16 %v425
        %v567 = vunpack.c.h.b16 %v425
        %v568 = vunpack.c.l.b16 %v426
        %v569 = vunpack.c.h.b16 %v426
        %v570 = vunpack.c.l.b16 %v427
        %v571 = vunpack.c.h.b16 %v427
        %v572 = vunpack.c.l.b16 %v428
        %v573 = vunpack.c.h.b16 %v428
        %v574 = vunpack.c.l.b16 %v429
        %v575 = vunpack.c.h.b16 %v429
        %v576 = vunpack.c.l.b16 %v430
        %v577 = vunpack.c.h.b16 %v430
        %v578 = vunpack.c.l.b16 %v431
        %v579 = vunpack.c.h.b16 %v431
        %v580 = vunpack.c.l.b16 %v432
        %v581 = vunpack.c.h.b16 %v432
        %v582 = vunpack.c.l.b16 %v433
        %v583 = vunpack.c.h.b16 %v433
        %v584 = vunpack.c.l.b16 %v434
        %v585 = vunpack.c.h.b16 %v434
        %v586 = vunpack.c.l.b16 %v435
        %v587 = vunpack.c.h.b16 %v435
        %v588 = vunpack.c.l.b16 %v436
        %v589 = vunpack.c.h.b16 %v436
        %v590 = vunpack.c.l.b16 %v437
        %v591 = vunpack.c.h.b16 %v437
        %v592 = vunpack.c.l.b16 %v438
        %v593 = vunpack.c.h.b16 %v438
        %v594 = vunpack.c.l.b16 %v439
        %v595 = vunpack.c.h.b16 %v439
        %v596 = vunpack.c.l.b16 %v440
        %v597 = vunpack.c.h.b16 %v440
        %v598 = vunpack.c.l.b16 %v441
        %v599 = vunpack.c.h.b16 %v441
        %v600 = vunpack.c.l.b16 %v442
        %v601 = vunpack.c.h.b16 %v442
        %v602 = vunpack.c.l.b16 %v443
        %v603 = vunpack.c.h.b16 %v443
        %v604 = vunpack.c.l.b16 %v444
        %v605 = vunpack.c.h.b16 %v444
        %v606 = vunpack.c.l.b16 %v445
        %v607 = vunpack.c.h.b16 %v445
        %v608 = vunpack.c.l.b16 %v446
        %v609 = vunpack.c.h.b16 %v446
        %v610 = vunpack.c.l.b16 %v447
        %v611 = vunpack.c.h.b16 %v447
        %v612 = vunpack.c.l.b16 %v448
        %v613 = vunpack.c.h.b16 %v448
        %v614 = vunpack.c.l.b16 %v449
        %v615 = vunpack.c.h.b16 %v449
        %v616 = vunpack.c.l.b16 %v450
        %v617 = vunpack.c.h.b16 %v450
        %v618 = vunpack.c.l.b16 %v451
        %v619 = vunpack.c.h.b16 %v451
        %v620 = vunpack.c.l.b16 %v452
        %v621 = vunpack.c.h.b16 %v452
        %v622 = vunpack.c.l.b16 %v453
        %v623 = vunpack.c.h.b16 %v453
        %v624 = vunpack.c.l.b16 %v454
        %v625 = vunpack.c.h.b16 %v454
        %v626 = vunpack.c.l.b16 %v455
        %v627 = vunpack.c.h.b16 %v455
        %v628 = vunpack.c.l.b16 %v456
        %v629 = vunpack.c.h.b16 %v456
        %v630 = vunpack.c.l.b16 %v457
        %v631 = vunpack.c.h.b16 %v457
        %v632 = vunpack.c.l.b16 %v458
        %v633 = vunpack.c.h.b16 %v458
        %v634 = vunpack.c.l.b16 %v459
        %v635 = vunpack.c.h.b16 %v459
        %v636 = vunpack.c.l.b16 %v460
        %v637 = vunpack.c.h.b16 %v460
        %v638 = vunpack.c.l.b16 %v461
        %v639 = vunpack.c.h.b16 %v461
        %v640 = vunpack.c.l.b16 %v462
        %v641 = vunpack.c.h.b16 %v462
        %v642 = vunpack.c.l.b16 %v463
        %v643 = vunpack.c.h.b16 %v463
        %v644 = vunpack.c.l.b16 %v464
        %v645 = vunpack.c.h.b16 %v464
        %v646 = vunpack.c.l.b16 %v465
        %v647 = vunpack.c.h.b16 %v465
        %v648 = vunpack.c.l.b16 %v466
        %v649 = vunpack.c.h.b16 %v466
        %v650 = vunpack.c.l.b16 %v467
        %v651 = vunpack.c.h.b16 %v467
        %v652 = vunpack.c.l.b16 %v468
        %v653 = vunpack.c.h.b16 %v468
        %v654 = vunpack.c.l.b16 %v469
        %v655 = vunpack.c.h.b16 %v469
        %v656 = vunpack.c.l.b16 %v470
        %v657 = vunpack.c.h.b16 %v470
        %v658 = vunpack.c.l.b16 %v471
        %v659 = vunpack.c.h.b16 %v471
        %v660 = vunpack.c.l.b16 %v472
        %v661 = vunpack.c.h.b16 %v472
        %v662 = vunpack.c.l.b16 %v473
        %v663 = vunpack.c.h.b16 %v473
        %v664 = vunpack.c.l.b16 %v474
        %v665 = vunpack.c.h.b16 %v474
        %v666 = vunpack.c.l.b16 %v475
        %v667 = vunpack.c.h.b16 %v475
        %v668 = vpack.c.b16 %v548, %v540
        %v669 = vpack.c.b16 %v549, %v541
        %v670 = vpack.c.b16 %v550, %v542
        %v671 = vpack.c.b16 %v551, %v543
        %v672 = vpack.c.b16 %v552, %v544
        %v673 = vpack.c.b16 %v553, %v545
        %v674 = vpack.c.b16 %v554, %v546
        %v675 = vpack.c.b16 %v555, %v547
        %v676 = vpack.c.b16 %v564, %v556
        %v677 = vpack.c.b16 %v565, %v557
        %v678 = vpack.c.b16 %v566, %v558
        %v679 = vpack.c.b16 %v567, %v559
        %v680 = vpack.c.b16 %v568, %v560
        %v681 = vpack.c.b16 %v569, %v561
        %v682 = vpack.c.b16 %v570, %v562
        %v683 = vpack.c.b16 %v571, %v563
        %v684 = vpack.c.b16 %v580, %v572
        %v685 = vpack.c.b16 %v581, %v573
        %v686 = vpack.c.b16 %v582, %v574
        %v687 = vpack.c.b16 %v583, %v575
        %v688 = vpack.c.b16 %v584, %v576
        %v689 = vpack.c.b16 %v585, %v577
        %v690 = vpack.c.b16 %v586, %v578
        %v691 = vpack.c.b16 %v587, %v579
        %v692 = vpack.c.b16 %v596, %v588
        %v693 = vpack.c.b16 %v597, %v589
        %v694 = vpack.c.b16 %v598, %v590
        %v695 = vpack.c.b16 %v599, %v591
        %v696 = vpack.c.b16 %v600, %v592
        %v697 = vpack.c.b16 %v601, %v593
        %v698 = vpack.c.b16 %v602, %v594
        %v699 = vpack.c.b16 %v603, %v595
        %v700 = vpack.c.b16 %v612, %v604
        %v701 = vpack.c.b16 %v613, %v605
        %v702 = vpack.c.b16 %v614, %v606
        %v703 = vpack.c.b16 %v615, %v607
        %v704 = vpack.c.b16 %v616, %v608
        %v705 = vpack.c.b16 %v617, %v609
        %v706 = vpack.c.b16 %v618, %v610
        %v707 = vpack.c.b16 %v619, %v611
        %v708 = vpack.c.b16 %v628, %v620
        %v709 = vpack.c.b16 %v629, %v621
        %v710 = vpack.c.b16 %v630, %v622
        %v711 = vpack.c.b16 %v631, %v623
        %v712 = vpack.c.b16 %v632, %v624
        %v713 = vpack.c.b16 %v633, %v625
        %v714 = vpack.c.b16 %v634, %v626
        %v715 = vpack.c.b16 %v635, %v627
        %v716 = vpack.c.b16 %v644, %v636
        %v717 = vpack.c.b16 %v645, %v637
        %v718 = vpack.c.b16 %v646, %v638
        %v719 = vpack.c.b16 %v647, %v639
        %v720 = vpack.c.b16 %v648, %v640
        %v721 = vpack.c.b16 %v649, %v641
        %v722 = vpack.c.b16 %v650, %v642
        %v723 = vpack.c.b16 %v651, %v643
        %v724 = vpack.c.b16 %v660, %v652
        %v725 = vpack.c.b16 %v661, %v653
        %v726 = vpack.c.b16 %v662, %v654
        %v727 = vpack.c.b16 %v663, %v655
        %v728 = vpack.c.b16 %v664, %v656
        %v729 = vpack.c.b16 %v665, %v657
        %v730 = vpack.c.b16 %v666, %v658
        %v731 = vpack.c.b16 %v667, %v659
        %796 = vmatpush.bf16.msra.mxu0 %v724
        %797 = vmatpush.bf16.msra.mxu0 %v716
        %798 = vmatpush.bf16.msra.mxu0 %v708
        %799 = vmatpush.bf16.msra.mxu0 %v700
        %800 = vmatpush.bf16.msra.mxu0 %v692
        %801 = vmatpush.bf16.msra.mxu0 %v684
        %802 = vmatpush.bf16.msra.mxu0 %v676
        %803 = vmatpush.bf16.msra.mxu0 %v668
        %804 = vmatmul.bf16.gmra.mxu0 %v411
        %v805 = vpop.f32.mrf.mxu0
        %v806 = vadd.f32 0.0, %v805
        %v807 = vpop.f32.mrf.mxu0
        %v808 = vadd.f32 0.0, %v807
        %809 = vdwg.mxu0
        %810 = vmatpush.bf16.msra.mxu0 %v725
        %811 = vmatpush.bf16.msra.mxu0 %v717
        %812 = vmatpush.bf16.msra.mxu0 %v709
        %813 = vmatpush.bf16.msra.mxu0 %v701
        %814 = vmatpush.bf16.msra.mxu0 %v693
        %815 = vmatpush.bf16.msra.mxu0 %v685
        %816 = vmatpush.bf16.msra.mxu0 %v677
        %817 = vmatpush.bf16.msra.mxu0 %v669
        %818 = vmatmul.bf16.gmra.mxu0 %v411
        %v819 = vpop.f32.mrf.mxu0
        %v820 = vadd.f32 0.0, %v819
        %v821 = vpop.f32.mrf.mxu0
        %v822 = vadd.f32 0.0, %v821
        %823 = vdwg.mxu0
        %824 = vmatpush.bf16.msra.mxu0 %v726
        %825 = vmatpush.bf16.msra.mxu0 %v718
        %826 = vmatpush.bf16.msra.mxu0 %v710
        %827 = vmatpush.bf16.msra.mxu0 %v702
        %828 = vmatpush.bf16.msra.mxu0 %v694
        %829 = vmatpush.bf16.msra.mxu0 %v686
        %830 = vmatpush.bf16.msra.mxu0 %v678
        %831 = vmatpush.bf16.msra.mxu0 %v670
        %832 = vmatmul.bf16.gmra.mxu0 %v411
        %v833 = vpop.f32.mrf.mxu0
        %v834 = vadd.f32 0.0, %v833
        %v835 = vpop.f32.mrf.mxu0
        %v836 = vadd.f32 0.0, %v835
        %837 = vdwg.mxu0
        %838 = vmatpush.bf16.msra.mxu0 %v727
        %839 = vmatpush.bf16.msra.mxu0 %v719
        %840 = vmatpush.bf16.msra.mxu0 %v711
        %841 = vmatpush.bf16.msra.mxu0 %v703
        %842 = vmatpush.bf16.msra.mxu0 %v695
        %843 = vmatpush.bf16.msra.mxu0 %v687
        %844 = vmatpush.bf16.msra.mxu0 %v679
        %845 = vmatpush.bf16.msra.mxu0 %v671
        %846 = vmatmul.bf16.gmra.mxu0 %v411
        %v847 = vpop.f32.mrf.mxu0
        %v848 = vadd.f32 0.0, %v847
        %v849 = vpop.f32.mrf.mxu0
        %v850 = vadd.f32 0.0, %v849
        %851 = vdwg.mxu0
        %852 = vmatpush.bf16.msra.mxu0 %v728
        %853 = vmatpush.bf16.msra.mxu0 %v720
        %854 = vmatpush.bf16.msra.mxu0 %v712
        %855 = vmatpush.bf16.msra.mxu0 %v704
        %856 = vmatpush.bf16.msra.mxu0 %v696
        %857 = vmatpush.bf16.msra.mxu0 %v688
        %858 = vmatpush.bf16.msra.mxu0 %v680
        %859 = vmatpush.bf16.msra.mxu0 %v672
        %860 = vmatmul.bf16.gmra.mxu0 %v411
        %v861 = vpop.f32.mrf.mxu0
        %v862 = vadd.f32 0.0, %v861
        %v863 = vpop.f32.mrf.mxu0
        %v864 = vadd.f32 0.0, %v863
        %865 = vdwg.mxu0
        %866 = vmatpush.bf16.msra.mxu0 %v729
        %867 = vmatpush.bf16.msra.mxu0 %v721
        %868 = vmatpush.bf16.msra.mxu0 %v713
        %869 = vmatpush.bf16.msra.mxu0 %v705
        %870 = vmatpush.bf16.msra.mxu0 %v697
        %871 = vmatpush.bf16.msra.mxu0 %v689
        %872 = vmatpush.bf16.msra.mxu0 %v681
        %873 = vmatpush.bf16.msra.mxu0 %v673
        %874 = vmatmul.bf16.gmra.mxu0 %v411
        %v875 = vpop.f32.mrf.mxu0
        %v876 = vadd.f32 0.0, %v875
        %v877 = vpop.f32.mrf.mxu0
        %v878 = vadd.f32 0.0, %v877
        %879 = vdwg.mxu0
        %880 = vmatpush.bf16.msra.mxu0 %v730
        %881 = vmatpush.bf16.msra.mxu0 %v722
        %882 = vmatpush.bf16.msra.mxu0 %v714
        %883 = vmatpush.bf16.msra.mxu0 %v706
        %884 = vmatpush.bf16.msra.mxu0 %v698
        %885 = vmatpush.bf16.msra.mxu0 %v690
        %886 = vmatpush.bf16.msra.mxu0 %v682
        %887 = vmatpush.bf16.msra.mxu0 %v674
        %888 = vmatmul.bf16.gmra.mxu0 %v411
        %v889 = vpop.f32.mrf.mxu0
        %v890 = vadd.f32 0.0, %v889
        %v891 = vpop.f32.mrf.mxu0
        %v892 = vadd.f32 0.0, %v891
        %893 = vdwg.mxu0
        %894 = vmatpush.bf16.msra.mxu0 %v731
        %895 = vmatpush.bf16.msra.mxu0 %v723
        %896 = vmatpush.bf16.msra.mxu0 %v715
        %897 = vmatpush.bf16.msra.mxu0 %v707
        %898 = vmatpush.bf16.msra.mxu0 %v699
        %899 = vmatpush.bf16.msra.mxu0 %v691
        %900 = vmatpush.bf16.msra.mxu0 %v683
        %901 = vmatpush.bf16.msra.mxu0 %v675
        %902 = vmatmul.bf16.gmra.mxu0 %v411
        %v903 = vpop.f32.mrf.mxu0
        %v904 = vadd.f32 0.0, %v903
        %v905 = vpop.f32.mrf.mxu0
        %v906 = vadd.f32 0.0, %v905
        %907 = vdwg.mxu0
        %v908 = vmax.f32 %v806, %v808
        %v909 = vrot.slane %v908, 4
        %v910 = vmax.f32 %v908, %v909
        %v911 = vrot.slane %v910, 2
        %v912 = vmax.f32 %v910, %v911
        %v913 = vrot.slane %v912, 1
        %v914 = vmax.f32 %v912, %v913
        %v915 = vmax.f32 %v820, %v822
        %v916 = vrot.slane %v915, 4
        %v917 = vmax.f32 %v915, %v916
        %v918 = vrot.slane %v917, 2
        %v919 = vmax.f32 %v917, %v918
        %v920 = vrot.slane %v919, 1
        %v921 = vmax.f32 %v919, %v920
        %v922 = vmax.f32 %v834, %v836
        %v923 = vrot.slane %v922, 4
        %v924 = vmax.f32 %v922, %v923
        %v925 = vrot.slane %v924, 2
        %v926 = vmax.f32 %v924, %v925
        %v927 = vrot.slane %v926, 1
        %v928 = vmax.f32 %v926, %v927
        %v929 = vmax.f32 %v848, %v850
        %v930 = vrot.slane %v929, 4
        %v931 = vmax.f32 %v929, %v930
        %v932 = vrot.slane %v931, 2
        %v933 = vmax.f32 %v931, %v932
        %v934 = vrot.slane %v933, 1
        %v935 = vmax.f32 %v933, %v934
        %v936 = vmax.f32 %v862, %v864
        %v937 = vrot.slane %v936, 4
        %v938 = vmax.f32 %v936, %v937
        %v939 = vrot.slane %v938, 2
        %v940 = vmax.f32 %v938, %v939
        %v941 = vrot.slane %v940, 1
        %v942 = vmax.f32 %v940, %v941
        %v943 = vmax.f32 %v876, %v878
        %v944 = vrot.slane %v943, 4
        %v945 = vmax.f32 %v943, %v944
        %v946 = vrot.slane %v945, 2
        %v947 = vmax.f32 %v945, %v946
        %v948 = vrot.slane %v947, 1
        %v949 = vmax.f32 %v947, %v948
        %v950 = vmax.f32 %v890, %v892
        %v951 = vrot.slane %v950, 4
        %v952 = vmax.f32 %v950, %v951
        %v953 = vrot.slane %v952, 2
        %v954 = vmax.f32 %v952, %v953
        %v955 = vrot.slane %v954, 1
        %v956 = vmax.f32 %v954, %v955
        %v957 = vmax.f32 %v904, %v906
        %v958 = vrot.slane %v957, 4
        %v959 = vmax.f32 %v957, %v958
        %v960 = vrot.slane %v959, 2
        %v961 = vmax.f32 %v959, %v960
        %v962 = vrot.slane %v961, 1
        %v963 = vmax.f32 %v961, %v962
        %v964 = vld [vmem:[%s301] sm:$0xff]
        %v973 = vrot.slane %v921, 7
        %v974 = vrot.slane %v928, 6
        %v975 = vrot.slane %v935, 5
        %v976 = vrot.slane %v942, 4
        %v977 = vrot.slane %v949, 3
        %v978 = vrot.slane %v956, 2
        %v979 = vrot.slane %v963, 1
        %vm980 = vcmask 1040384
        %v981 = vsel %vm980, %v914, %v973
        %vm982 = vcmask 1042434
        %v983 = vsel %vm982, %v974, %v975
        %vm984 = vcmask 1041408
        %v985 = vsel %vm984, %v981, %v983
        %vm986 = vcmask 1044484
        %v987 = vsel %vm986, %v976, %v977
        %vm988 = vcmask 1046534
        %v989 = vsel %vm988, %v978, %v979
        %vm990 = vcmask 1045508
        %v991 = vsel %vm990, %v987, %v989
        %v992 = vsel %vm334, %v985, %v991
        %v994 = vmax.f32 %v964, %v992
        %995 = vst [vmem:[%s301] sm:$0xff] %v994
        %s996 = sand.u32 %s175, 1
        %s997 = scalar_lea.sflag [#allocation4], %s996
        %s998 = sand.u32 %s175, 1
        %s999 = smul.addr %s998, 8
        %s1000 = scalar_lea.vmem [#allocation7], %s999
        // Predicated region
        $region57: #{tpu_custom_call.1} parent=43 // pred_check
          %p1001 = pneg %p185
        $region58: #{tpu_custom_call.1} parent=43 // pred_check_branch
          %1003 = sbr.rel (%p1001) target = $region60
        $region59: #{tpu_custom_call.1} parent=43 // pred_region
          %1005 = vsyncadd %s997, 0
          %s1006 = smul.addr %s26, 8
          %s1007 = scalar_lea.hbm %s6, %s1006
          %s1009 = sshll.u32 %s1000, 4
          %s1010 = int_to_ptr.vmem [resolvable:$true] %s1009
          %s1011 = sshll.u32 %s1007, 4
          %s1012 = int_to_ptr.hbm [resolvable:$true] %s1011
          %1014 = dma.vmem_to_hbm [thread:$0]  %s1010, 128, %s1012, %s997
        $region60: #{tpu_custom_call.1} parent=43 // pred_fallthru
          _
      $region44: #{tpu_custom_call.1} parent=5 // pred_fallthru
        _
      %p1015 = scmp.le.s32.totalorder 2, %s17
      // Predicated region
      $region61: #{tpu_custom_call.1} parent=5 // pred_check
        %p1016 = pneg %p1015
      $region62: #{tpu_custom_call.1} parent=5 // pred_check_branch
        %1018 = sbr.rel (%p1016) target = $region64
      $region63: #{tpu_custom_call.1} parent=5 // pred_region
        %s1019 = ssub.s32 %s17, 2
        // Predicated region
        $region65: #{tpu_custom_call.1} parent=63 // pred_check
          %p1020 = pneg %p191
        $region66: #{tpu_custom_call.1} parent=63 // pred_check_branch
          %1022 = sbr.rel (%p1020) target = $region68
        $region67: #{tpu_custom_call.1} parent=63 // pred_region
          %s1023 = sand.u32 %s176, 1
          %s1024 = scalar_lea.sflag [#allocation4], %s1023
          %s1025 = sand.u32 %s176, 1
          %s1026 = smul.addr %s1025, 8
          %s1027 = scalar_lea.vmem [#allocation7], %s1026
          %1029 = dma.done %s1024, 128
        $region68: #{tpu_custom_call.1} parent=63 // pred_fallthru
          _
      $region64: #{tpu_custom_call.1} parent=5 // pred_fallthru
        _
    $region6: #{tpu_custom_call.1} parent=1 // loop_footer
      %s21 = sadd.s32 1, %s17
    $region7: #{tpu_custom_call.1} parent=1 // loop_footer_branch
      %16 = sbr.rel target = $region3
    $region8: #{tpu_custom_call.1} parent=1 // loop_exit
      _
    %1030 = vsyncpa [#allocation3], 1
    %s1031 = scalar_lea.sflag [#allocation3], 1
    %1032 = vsyncpa %s1031, 1
    %1033 = vsyncpa [#allocation6], 1
    %1034 = vsyncpa [#allocation4], 1
    %s1035 = scalar_lea.sflag [#allocation4], 1
    %1036 = vsyncpa %s1035, 1

</llo_original>
